<compile_context>
chip_gen: v6e
topology: v6e:2x2x1
jax: 0.10.0
libtpu: 0.0.40
codegen_flags: <defaults>
</compile_context>

<pallas_src>
import jax
import jax.numpy as jnp
from jax.experimental import pallas as pl
from jax.experimental.pallas import tpu as pltpu

CH_HISTORY = 2
N_I = 3 + CH_HISTORY     # = 5
N_I_PAD = 8              # feature dim padded to a sublane multiple
HIDDEN = 128
N_OUT = 4


def _round_up(x, m):
    return ((x + m - 1) // m) * m


def rnn_kernel(xT_ref, w_igo_ref, b_igo_ref, w_out_ref, b_out_ref, outT_ref):
    # xT_ref:    (N_I_PAD, TILE_B)   f32   features x batch (batch in lanes)
    # w_igo_ref: (3*HIDDEN, N_I_PAD) f32   W_ih rows for [i, g, o], K zero-padded
    # b_igo_ref: (3*HIDDEN, 1)       f32   (b_ih + b_hh) rows for [i, g, o]
    # w_out_ref: (N_OUT, HIDDEN)     f32
    # b_out_ref: (N_OUT, 1)          f32
    # outT_ref:  (N_OUT, TILE_B)     f32
    gates = (
        jnp.dot(w_igo_ref[...], xT_ref[...], preferred_element_type=jnp.float32)
        + b_igo_ref[...]
    )  # (3H, TILE_B)

    i_g = jax.nn.sigmoid(gates[0 * HIDDEN:1 * HIDDEN, :])
    g_g = jnp.tanh(gates[1 * HIDDEN:2 * HIDDEN, :])
    o_g = jax.nn.sigmoid(gates[2 * HIDDEN:3 * HIDDEN, :])

    # c0 == 0, so c = i*g; the forget gate's f*c0 term is exactly zero and its
    # weight/bias rows were dropped in the wrapper.
    h = o_g * jnp.tanh(i_g * g_g)  # (HIDDEN, TILE_B)

    outT_ref[...] = (
        jnp.dot(w_out_ref[...], h, preferred_element_type=jnp.float32)
        + b_out_ref[...]
    )


def rnn_forward(x, w_ih, b_ih, b_hh, w_out, b_out, tile_b=512):
    """x: any shape with prod % N_I == 0 (mirrors x.view(-1, 1, 5)). Returns (B, 4)."""
    x2d = jnp.reshape(x, (-1, N_I)).astype(jnp.float32)   # (B, 5)
    B = x2d.shape[0]

    # Lane-dense tile: multiple of 128, but don't over-pad tiny batches.
    tile_b = min(tile_b, _round_up(B, 128))
    B_pad = _round_up(B, tile_b)
    n_tiles = B_pad // tile_b

    # Batch into the lane dim; pad features 5 -> 8 and batch -> B_pad with zeros.
    xT = jnp.pad(x2d, ((0, B_pad - B), (0, N_I_PAD - N_I))).T   # (N_I_PAD, B_pad)

    w = w_ih.astype(jnp.float32)              # (4H, N_I), PyTorch order [i, f, g, o]
    b = (b_ih + b_hh).astype(jnp.float32)     # (4H,)
    # Drop the forget gate (it multiplies c0 == 0); keep [i, g, o].
    w_igo = jnp.concatenate(
        [w[0:HIDDEN], w[2 * HIDDEN:3 * HIDDEN], w[3 * HIDDEN:4 * HIDDEN]], axis=0)
    w_igo = jnp.pad(w_igo, ((0, 0), (0, N_I_PAD - N_I)))        # (3H, N_I_PAD)
    b_igo = jnp.concatenate(
        [b[0:HIDDEN], b[2 * HIDDEN:3 * HIDDEN], b[3 * HIDDEN:4 * HIDDEN]], axis=0)
    b_igo = b_igo.reshape(3 * HIDDEN, 1)                        # (3H, 1)

    w_o = w_out.astype(jnp.float32)                             # (N_OUT, HIDDEN)
    b_o = b_out.astype(jnp.float32).reshape(N_OUT, 1)           # (N_OUT, 1)

    flops = 2 * B_pad * (3 * HIDDEN * N_I_PAD + N_OUT * HIDDEN)
    transcendentals = 4 * B_pad * HIDDEN
    bytes_accessed = 4 * (
        xT.size + N_OUT * B_pad + w_igo.size + b_igo.size + w_o.size + b_o.size)

    outT = pl.pallas_call(
        rnn_kernel,
        out_shape=jax.ShapeDtypeStruct((N_OUT, B_pad), jnp.float32),
        grid_spec=pltpu.PrefetchScalarGridSpec(
            num_scalar_prefetch=0,
            grid=(n_tiles,),
            in_specs=[
                pl.BlockSpec((N_I_PAD, tile_b), lambda i: (0, i)),       # x^T tile
                pl.BlockSpec((3 * HIDDEN, N_I_PAD), lambda i: (0, 0)),   # resident
                pl.BlockSpec((3 * HIDDEN, 1), lambda i: (0, 0)),         # resident
                pl.BlockSpec((N_OUT, HIDDEN), lambda i: (0, 0)),         # resident
                pl.BlockSpec((N_OUT, 1), lambda i: (0, 0)),              # resident
            ],
            out_specs=pl.BlockSpec((N_OUT, tile_b), lambda i: (0, i)),
        ),
        compiler_params=pltpu.CompilerParams(
            dimension_semantics=("parallel",),      # megacore-shard batch on v7x
            vmem_limit_bytes=32 * 1024 * 1024,      # safe on v7x's 64 MiB VMEM
        ),
        cost_estimate=pl.CostEstimate(
            flops=flops,
            transcendentals=transcendentals,
            bytes_accessed=bytes_accessed,
        ),
    )(xT, w_igo, b_igo, w_o, b_o)

    return outT.T[:B]                                           # (B, N_OUT)


def rnn_forward_ref(x, w_ih, b_ih, b_hh, w_out, b_out):
    """Pure-JAX reference (full LSTM-cell math with h0=c0=0)."""
    x2d = jnp.reshape(x, (-1, N_I)).astype(jnp.float32)
    gates = x2d @ w_ih.T + b_ih + b_hh
    i_g = jax.nn.sigmoid(gates[:, 0 * HIDDEN:1 * HIDDEN])
    g_g = jnp.tanh(gates[:, 2 * HIDDEN:3 * HIDDEN])
    o_g = jax.nn.sigmoid(gates[:, 3 * HIDDEN:4 * HIDDEN])
    h = o_g * jnp.tanh(i_g * g_g)
    return h @ w_out.T + b_out


if __name__ == "__main__":
    key = jax.random.PRNGKey(0)
    k_x, k_wih, k_bih, k_bhh, k_wo, k_bo = jax.random.split(key, 6)

    B = 8
    stdv = 1.0 / jnp.sqrt(jnp.float32(HIDDEN))
    x = jax.random.normal(k_x, (B, N_I), dtype=jnp.float32)        # views to (B,1,5)
    w_ih = jax.random.uniform(k_wih, (4 * HIDDEN, N_I), minval=-stdv, maxval=stdv)
    b_ih = jax.random.uniform(k_bih, (4 * HIDDEN,), minval=-stdv, maxval=stdv)
    b_hh = jax.random.uniform(k_bhh, (4 * HIDDEN,), minval=-stdv, maxval=stdv)
    w_out = jax.random.uniform(k_wo, (N_OUT, HIDDEN), minval=-stdv, maxval=stdv)
    b_out = jax.random.uniform(k_bo, (N_OUT,), minval=-stdv, maxval=stdv)

    out = rnn_forward(x, w_ih, b_ih, b_hh, w_out, b_out)
    out = jax.block_until_ready(out)

    ref = rnn_forward_ref(x, w_ih, b_ih, b_hh, w_out, b_out)
    assert out.shape == (B, N_OUT)
    assert jnp.max(jnp.abs(out - ref)) < 1e-4

    print("KERNEL_OK")
</pallas_src>

<mosaic_0001>
module attributes {stable_mosaic.version = 11 : i64} {
  func.func @rnn_kernel(%arg0: i32, %arg1: memref<8x128xf32, #tpu.memory_space<vmem>>, %arg2: memref<384x8xf32, #tpu.memory_space<vmem>>, %arg3: memref<384x1xf32, #tpu.memory_space<vmem>>, %arg4: memref<4x128xf32, #tpu.memory_space<vmem>>, %arg5: memref<4x1xf32, #tpu.memory_space<vmem>>, %arg6: memref<4x128xf32, #tpu.memory_space<vmem>>) attributes {dimension_semantics = [#tpu.dimension_semantics<parallel>], iteration_bounds = array<i64: 1>, scalar_prefetch = 0 : i64, scratch_operands = 0 : i64, tpu.core_type = #tpu.core_type<tc>, window_params = [{transform_indices = @transform_0, window_bounds = array<i64: 8, 128>}, {pipeline_mode = #tpu.pipeline_mode<synchronous>, transform_indices = @transform_1, window_bounds = array<i64: 384, 8>}, {pipeline_mode = #tpu.pipeline_mode<synchronous>, transform_indices = @transform_2, window_bounds = array<i64: 384, 1>}, {pipeline_mode = #tpu.pipeline_mode<synchronous>, transform_indices = @transform_3, window_bounds = array<i64: 4, 128>}, {pipeline_mode = #tpu.pipeline_mode<synchronous>, transform_indices = @transform_4, window_bounds = array<i64: 4, 1>}, {transform_indices = @transform_5, window_bounds = array<i64: 4, 128>}]} {
    %c0 = arith.constant 0 : index
    %c0_0 = arith.constant 0 : index
    %0 = vector.load %arg2[%c0, %c0_0] : memref<384x8xf32, #tpu.memory_space<vmem>>, vector<384x8xf32>
    %c0_1 = arith.constant 0 : index
    %c0_2 = arith.constant 0 : index
    %1 = vector.load %arg1[%c0_1, %c0_2] : memref<8x128xf32, #tpu.memory_space<vmem>>, vector<8x128xf32>
    %cst = arith.constant dense<0.000000e+00> : vector<384x128xf32>
    %2 = tpu.matmul %0, %1, %cst {dimension_numbers = #tpu.dot_dimension_numbers<[1], [0], [0], [1], [0, 0, 1, 1], [], []>} : vector<384x8xf32>, vector<8x128xf32>, vector<384x128xf32> -> vector<384x128xf32>
    %c0_3 = arith.constant 0 : index
    %c0_4 = arith.constant 0 : index
    %3 = vector.load %arg3[%c0_3, %c0_4] : memref<384x1xf32, #tpu.memory_space<vmem>>, vector<384x1xf32>
    %4 = vector.broadcast %3 : vector<384x1xf32> to vector<384x128xf32>
    %5 = arith.addf %2, %4 : vector<384x128xf32>
    %6 = vector.extract_strided_slice %5 {offsets = [0, 0], sizes = [128, 128], strides = [1, 1]} : vector<384x128xf32> to vector<128x128xf32>
    %7 = arith.negf %6 : vector<128x128xf32>
    %8 = math.exp %7 : vector<128x128xf32>
    %cst_5 = arith.constant 1.000000e+00 : f32
    %9 = vector.broadcast %cst_5 : f32 to vector<128x128xf32>
    %10 = arith.addf %9, %8 : vector<128x128xf32>
    %11 = arith.divf %9, %10 : vector<128x128xf32>
    %12 = vector.extract_strided_slice %5 {offsets = [128, 0], sizes = [128, 128], strides = [1, 1]} : vector<384x128xf32> to vector<128x128xf32>
    %13 = math.tanh %12 : vector<128x128xf32>
    %14 = vector.extract_strided_slice %5 {offsets = [256, 0], sizes = [128, 128], strides = [1, 1]} : vector<384x128xf32> to vector<128x128xf32>
    %15 = arith.negf %14 : vector<128x128xf32>
    %16 = math.exp %15 : vector<128x128xf32>
    %cst_6 = arith.constant 1.000000e+00 : f32
    %17 = vector.broadcast %cst_6 : f32 to vector<128x128xf32>
    %18 = arith.addf %17, %16 : vector<128x128xf32>
    %19 = arith.divf %17, %18 : vector<128x128xf32>
    %20 = arith.mulf %11, %13 : vector<128x128xf32>
    %21 = math.tanh %20 : vector<128x128xf32>
    %22 = arith.mulf %19, %21 : vector<128x128xf32>
    %c0_7 = arith.constant 0 : index
    %c0_8 = arith.constant 0 : index
    %23 = vector.load %arg4[%c0_7, %c0_8] : memref<4x128xf32, #tpu.memory_space<vmem>>, vector<4x128xf32>
    %cst_9 = arith.constant dense<0.000000e+00> : vector<4x128xf32>
    %24 = tpu.matmul %23, %22, %cst_9 {dimension_numbers = #tpu.dot_dimension_numbers<[1], [0], [0], [1], [0, 0, 1, 1], [], []>} : vector<4x128xf32>, vector<128x128xf32>, vector<4x128xf32> -> vector<4x128xf32>
    %c0_10 = arith.constant 0 : index
    %c0_11 = arith.constant 0 : index
    %25 = vector.load %arg5[%c0_10, %c0_11] : memref<4x1xf32, #tpu.memory_space<vmem>>, vector<4x1xf32>
    %26 = vector.broadcast %25 : vector<4x1xf32> to vector<4x128xf32>
    %27 = arith.addf %24, %26 : vector<4x128xf32>
    %c0_12 = arith.constant 0 : index
    %c0_13 = arith.constant 0 : index
    %28 = vector.load %arg6[%c0_12, %c0_13] : memref<4x128xf32, #tpu.memory_space<vmem>>, vector<4x128xf32>
    tpu.vector_store %arg6[%c0_12, %c0_13], %27 {strides = array<i32>} : memref<4x128xf32, #tpu.memory_space<vmem>>, vector<4x128xf32>,
    return
  }
  func.func @transform_0(%arg0: i32) -> (i32, i32) {
    %c0_i32 = arith.constant 0 : i32
    %c0_i32_0 = arith.constant 0 : i32
    return %c0_i32, %arg0 : i32, i32
  }
  func.func @transform_1(%arg0: i32) -> (i32, i32) {
    %c0_i32 = arith.constant 0 : i32
    %c0_i32_0 = arith.constant 0 : i32
    %c0_i32_1 = arith.constant 0 : i32
    return %c0_i32, %c0_i32_0 : i32, i32
  }
  func.func @transform_2(%arg0: i32) -> (i32, i32) {
    %c0_i32 = arith.constant 0 : i32
    %c0_i32_0 = arith.constant 0 : i32
    %c0_i32_1 = arith.constant 0 : i32
    return %c0_i32, %c0_i32_0 : i32, i32
  }
  func.func @transform_3(%arg0: i32) -> (i32, i32) {
    %c0_i32 = arith.constant 0 : i32
    %c0_i32_0 = arith.constant 0 : i32
    %c0_i32_1 = arith.constant 0 : i32
    return %c0_i32, %c0_i32_0 : i32, i32
  }
  func.func @transform_4(%arg0: i32) -> (i32, i32) {
    %c0_i32 = arith.constant 0 : i32
    %c0_i32_0 = arith.constant 0 : i32
    %c0_i32_1 = arith.constant 0 : i32
    return %c0_i32, %c0_i32_0 : i32, i32
  }
  func.func @transform_5(%arg0: i32) -> (i32, i32) {
    %c0_i32 = arith.constant 0 : i32
    %c0_i32_0 = arith.constant 0 : i32
    return %c0_i32, %arg0 : i32, i32
  }
}

</mosaic_0001>

<llo_original>
// kernel: tpu_custom_call.1
$region0: #{tpu_custom_call.1}
  #allocation0 [shape = 'u32[]', space=smem, size = 0x4, offset = 0x4, fixed_abs, tag = 'smem constant byte address 0x4 - core index']
  #allocation1 [shape = 'u32[144,128]{1,0:T(1,128)}', space=vmem, size = 0x12000, scoped, tag = 'internal scratch']
  %s0 = inlined_call_operand.vmem [shape: f32[8,128], index: 0, kind: input, shape index: {}]
  %s1 = inlined_call_operand.vmem [shape: f32[384,8], index: 1, kind: input, shape index: {}]
  %s2 = inlined_call_operand.vmem [shape: f32[384,1], index: 2, kind: input, shape index: {}]
  %s3 = inlined_call_operand.vmem [shape: f32[4,128], index: 3, kind: input, shape index: {}]
  %s4 = inlined_call_operand.vmem [shape: f32[4,1], index: 4, kind: input, shape index: {}]
  %s5 = inlined_call_operand.hbm [shape: f32[4,128], index: 5, kind: output, shape index: {}]
  %s6 = sld [smem:[#allocation0]]
  $region30: #{tpu_custom_call.1} parent=0
    _
  %s8 = ssub.s32 1, %s6
  %s9 = scalar_select 0, %s8, %s6
  $region1: #{tpu_custom_call.1} parent=0
    #allocation2 [shape = 'u8[2048]{0}', space=vmem, size = 0x800, scoped, tag = 'output window, operand 0, single buffered']
    #allocation3 [shape = 's32[1]{0}', space=sflag, size = 0x4, scoped, tag = 'scoped memory for tpu_custom_call.1']
    %10 = vsyncpa [#allocation3], 0
    // Predicated region
    $region2: #{tpu_custom_call.1} parent=1 // pred_check
      _
    $region3: #{tpu_custom_call.1} parent=1 // pred_check_branch
      %12 = sbr.rel (0) target = $region5
    $region4: #{tpu_custom_call.1} parent=1 // pred_region
      _
    $region5: #{tpu_custom_call.1} parent=1 // pred_fallthru
      _
    // Predicated region
    $region6: #{tpu_custom_call.1} parent=1 // pred_check
      _
    $region7: #{tpu_custom_call.1} parent=1 // pred_check_branch
      %14 = sbr.rel (0) target = $region9
    $region8: #{tpu_custom_call.1} parent=1 // pred_region
      _
    $region9: #{tpu_custom_call.1} parent=1 // pred_fallthru
      _
    // Predicated region
    $region10: #{tpu_custom_call.1} parent=1 // pred_check
      _
    $region11: #{tpu_custom_call.1} parent=1 // pred_check_branch
      %16 = sbr.rel (0) target = $region13
    $region12: #{tpu_custom_call.1} parent=1 // pred_region
      _
    $region13: #{tpu_custom_call.1} parent=1 // pred_fallthru
      _
    // Predicated region
    $region14: #{tpu_custom_call.1} parent=1 // pred_check
      _
    $region15: #{tpu_custom_call.1} parent=1 // pred_check_branch
      %18 = sbr.rel (0) target = $region17
    $region16: #{tpu_custom_call.1} parent=1 // pred_region
      _
    $region17: #{tpu_custom_call.1} parent=1 // pred_fallthru
      _
    // Predicated region
    $region18: #{tpu_custom_call.1} parent=1 // pred_check
      _
    $region19: #{tpu_custom_call.1} parent=1 // pred_check_branch
      %20 = sbr.rel (0) target = $region21
    $region20: #{tpu_custom_call.1} parent=1 // pred_region
      _
    $region21: #{tpu_custom_call.1} parent=1 // pred_fallthru
      _
    %v21 = vld [vmem:[%s1] sm:$0xff]
    %v22 = vld [vmem:[%s1 + $0x8] sm:$0xff]
    %v23 = vld [vmem:[%s1 + $0x10] sm:$0xff]
    %v24 = vld [vmem:[%s1 + $0x18] sm:$0xff]
    %v25 = vld [vmem:[%s1 + $0x20] sm:$0xff]
    %v26 = vld [vmem:[%s1 + $0x28] sm:$0xff]
    %v27 = vld [vmem:[%s1 + $0x30] sm:$0xff]
    %v28 = vld [vmem:[%s1 + $0x38] sm:$0xff]
    %v29 = vld [vmem:[%s1 + $0x40] sm:$0xff]
    %v30 = vld [vmem:[%s1 + $0x48] sm:$0xff]
    %v31 = vld [vmem:[%s1 + $0x50] sm:$0xff]
    %v32 = vld [vmem:[%s1 + $0x58] sm:$0xff]
    %v33 = vld [vmem:[%s1 + $0x60] sm:$0xff]
    %v34 = vld [vmem:[%s1 + $0x68] sm:$0xff]
    %v35 = vld [vmem:[%s1 + $0x70] sm:$0xff]
    %v36 = vld [vmem:[%s1 + $0x78] sm:$0xff]
    %v37 = vld [vmem:[%s1 + $0x80] sm:$0xff]
    %v38 = vld [vmem:[%s1 + $0x88] sm:$0xff]
    %v39 = vld [vmem:[%s1 + $0x90] sm:$0xff]
    %v40 = vld [vmem:[%s1 + $0x98] sm:$0xff]
    %v41 = vld [vmem:[%s1 + $0xa0] sm:$0xff]
    %v42 = vld [vmem:[%s1 + $0xa8] sm:$0xff]
    %v43 = vld [vmem:[%s1 + $0xb0] sm:$0xff]
    %v44 = vld [vmem:[%s1 + $0xb8] sm:$0xff]
    %v45 = vld [vmem:[%s1 + $0xc0] sm:$0xff]
    %v46 = vld [vmem:[%s1 + $0xc8] sm:$0xff]
    %v47 = vld [vmem:[%s1 + $0xd0] sm:$0xff]
    %v48 = vld [vmem:[%s1 + $0xd8] sm:$0xff]
    %v49 = vld [vmem:[%s1 + $0xe0] sm:$0xff]
    %v50 = vld [vmem:[%s1 + $0xe8] sm:$0xff]
    %v51 = vld [vmem:[%s1 + $0xf0] sm:$0xff]
    %v52 = vld [vmem:[%s1 + $0xf8] sm:$0xff]
    %v53 = vld [vmem:[%s1 + $0x100] sm:$0xff]
    %v54 = vld [vmem:[%s1 + $0x108] sm:$0xff]
    %v55 = vld [vmem:[%s1 + $0x110] sm:$0xff]
    %v56 = vld [vmem:[%s1 + $0x118] sm:$0xff]
    %v57 = vld [vmem:[%s1 + $0x120] sm:$0xff]
    %v58 = vld [vmem:[%s1 + $0x128] sm:$0xff]
    %v59 = vld [vmem:[%s1 + $0x130] sm:$0xff]
    %v60 = vld [vmem:[%s1 + $0x138] sm:$0xff]
    %v61 = vld [vmem:[%s1 + $0x140] sm:$0xff]
    %v62 = vld [vmem:[%s1 + $0x148] sm:$0xff]
    %v63 = vld [vmem:[%s1 + $0x150] sm:$0xff]
    %v64 = vld [vmem:[%s1 + $0x158] sm:$0xff]
    %v65 = vld [vmem:[%s1 + $0x160] sm:$0xff]
    %v66 = vld [vmem:[%s1 + $0x168] sm:$0xff]
    %v67 = vld [vmem:[%s1 + $0x170] sm:$0xff]
    %v68 = vld [vmem:[%s1 + $0x178] sm:$0xff]
    %v69 = vld [vmem:[%s0] sm:$0xff]
    %v70 = vld [vmem:[%s2] sm:$0xff]
    %v71 = vld [vmem:[%s2 + $0x8] sm:$0xff]
    %v72 = vld [vmem:[%s2 + $0x10] sm:$0xff]
    %v73 = vld [vmem:[%s2 + $0x18] sm:$0xff]
    %v74 = vld [vmem:[%s2 + $0x20] sm:$0xff]
    %v75 = vld [vmem:[%s2 + $0x28] sm:$0xff]
    %v76 = vld [vmem:[%s2 + $0x30] sm:$0xff]
    %v77 = vld [vmem:[%s2 + $0x38] sm:$0xff]
    %v78 = vld [vmem:[%s2 + $0x40] sm:$0xff]
    %v79 = vld [vmem:[%s2 + $0x48] sm:$0xff]
    %v80 = vld [vmem:[%s2 + $0x50] sm:$0xff]
    %v81 = vld [vmem:[%s2 + $0x58] sm:$0xff]
    %v82 = vld [vmem:[%s2 + $0x60] sm:$0xff]
    %v83 = vld [vmem:[%s2 + $0x68] sm:$0xff]
    %v84 = vld [vmem:[%s2 + $0x70] sm:$0xff]
    %v85 = vld [vmem:[%s2 + $0x78] sm:$0xff]
    %v86 = vld [vmem:[%s2 + $0x80] sm:$0xff]
    %v87 = vld [vmem:[%s2 + $0x88] sm:$0xff]
    %v88 = vld [vmem:[%s2 + $0x90] sm:$0xff]
    %v89 = vld [vmem:[%s2 + $0x98] sm:$0xff]
    %v90 = vld [vmem:[%s2 + $0xa0] sm:$0xff]
    %v91 = vld [vmem:[%s2 + $0xa8] sm:$0xff]
    %v92 = vld [vmem:[%s2 + $0xb0] sm:$0xff]
    %v93 = vld [vmem:[%s2 + $0xb8] sm:$0xff]
    %v94 = vld [vmem:[%s2 + $0xc0] sm:$0xff]
    %v95 = vld [vmem:[%s2 + $0xc8] sm:$0xff]
    %v96 = vld [vmem:[%s2 + $0xd0] sm:$0xff]
    %v97 = vld [vmem:[%s2 + $0xd8] sm:$0xff]
    %v98 = vld [vmem:[%s2 + $0xe0] sm:$0xff]
    %v99 = vld [vmem:[%s2 + $0xe8] sm:$0xff]
    %v100 = vld [vmem:[%s2 + $0xf0] sm:$0xff]
    %v101 = vld [vmem:[%s2 + $0xf8] sm:$0xff]
    %v102 = vld [vmem:[%s2 + $0x100] sm:$0xff]
    %v103 = vld [vmem:[%s2 + $0x108] sm:$0xff]
    %v104 = vld [vmem:[%s2 + $0x110] sm:$0xff]
    %v105 = vld [vmem:[%s2 + $0x118] sm:$0xff]
    %v106 = vld [vmem:[%s2 + $0x120] sm:$0xff]
    %v107 = vld [vmem:[%s2 + $0x128] sm:$0xff]
    %v108 = vld [vmem:[%s2 + $0x130] sm:$0xff]
    %v109 = vld [vmem:[%s2 + $0x138] sm:$0xff]
    %v110 = vld [vmem:[%s2 + $0x140] sm:$0xff]
    %v111 = vld [vmem:[%s2 + $0x148] sm:$0xff]
    %v112 = vld [vmem:[%s2 + $0x150] sm:$0xff]
    %v113 = vld [vmem:[%s2 + $0x158] sm:$0xff]
    %v114 = vld [vmem:[%s2 + $0x160] sm:$0xff]
    %v115 = vld [vmem:[%s2 + $0x168] sm:$0xff]
    %v116 = vld [vmem:[%s2 + $0x170] sm:$0xff]
    %v117 = vld [vmem:[%s2 + $0x178] sm:$0xff]
    %119 = vset.pattern.permute.xlu0 0
    %120 = vperm.xlu0 %119, %v70
    %v121 = vpop.permute.xlu0 %120
    %124 = vset.pattern.permute.xlu0 0
    %125 = vperm.xlu0 %124, %v71
    %v126 = vpop.permute.xlu0 %125
    %129 = vset.pattern.permute.xlu0 0
    %130 = vperm.xlu0 %129, %v72
    %v131 = vpop.permute.xlu0 %130
    %134 = vset.pattern.permute.xlu0 0
    %135 = vperm.xlu0 %134, %v73
    %v136 = vpop.permute.xlu0 %135
    %139 = vset.pattern.permute.xlu0 0
    %140 = vperm.xlu0 %139, %v74
    %v141 = vpop.permute.xlu0 %140
    %144 = vset.pattern.permute.xlu0 0
    %145 = vperm.xlu0 %144, %v75
    %v146 = vpop.permute.xlu0 %145
    %149 = vset.pattern.permute.xlu0 0
    %150 = vperm.xlu0 %149, %v76
    %v151 = vpop.permute.xlu0 %150
    %154 = vset.pattern.permute.xlu0 0
    %155 = vperm.xlu0 %154, %v77
    %v156 = vpop.permute.xlu0 %155
    %159 = vset.pattern.permute.xlu0 0
    %160 = vperm.xlu0 %159, %v78
    %v161 = vpop.permute.xlu0 %160
    %164 = vset.pattern.permute.xlu0 0
    %165 = vperm.xlu0 %164, %v79
    %v166 = vpop.permute.xlu0 %165
    %169 = vset.pattern.permute.xlu0 0
    %170 = vperm.xlu0 %169, %v80
    %v171 = vpop.permute.xlu0 %170
    %174 = vset.pattern.permute.xlu0 0
    %175 = vperm.xlu0 %174, %v81
    %v176 = vpop.permute.xlu0 %175
    %179 = vset.pattern.permute.xlu0 0
    %180 = vperm.xlu0 %179, %v82
    %v181 = vpop.permute.xlu0 %180
    %184 = vset.pattern.permute.xlu0 0
    %185 = vperm.xlu0 %184, %v83
    %v186 = vpop.permute.xlu0 %185
    %189 = vset.pattern.permute.xlu0 0
    %190 = vperm.xlu0 %189, %v84
    %v191 = vpop.permute.xlu0 %190
    %194 = vset.pattern.permute.xlu0 0
    %195 = vperm.xlu0 %194, %v85
    %v196 = vpop.permute.xlu0 %195
    %199 = vset.pattern.permute.xlu0 0
    %200 = vperm.xlu0 %199, %v86
    %v201 = vpop.permute.xlu0 %200
    %204 = vset.pattern.permute.xlu0 0
    %205 = vperm.xlu0 %204, %v87
    %v206 = vpop.permute.xlu0 %205
    %209 = vset.pattern.permute.xlu0 0
    %210 = vperm.xlu0 %209, %v88
    %v211 = vpop.permute.xlu0 %210
    %214 = vset.pattern.permute.xlu0 0
    %215 = vperm.xlu0 %214, %v89
    %v216 = vpop.permute.xlu0 %215
    %219 = vset.pattern.permute.xlu0 0
    %220 = vperm.xlu0 %219, %v90
    %v221 = vpop.permute.xlu0 %220
    %224 = vset.pattern.permute.xlu0 0
    %225 = vperm.xlu0 %224, %v91
    %v226 = vpop.permute.xlu0 %225
    %229 = vset.pattern.permute.xlu0 0
    %230 = vperm.xlu0 %229, %v92
    %v231 = vpop.permute.xlu0 %230
    %234 = vset.pattern.permute.xlu0 0
    %235 = vperm.xlu0 %234, %v93
    %v236 = vpop.permute.xlu0 %235
    %239 = vset.pattern.permute.xlu0 0
    %240 = vperm.xlu0 %239, %v94
    %v241 = vpop.permute.xlu0 %240
    %244 = vset.pattern.permute.xlu0 0
    %245 = vperm.xlu0 %244, %v95
    %v246 = vpop.permute.xlu0 %245
    %249 = vset.pattern.permute.xlu0 0
    %250 = vperm.xlu0 %249, %v96
    %v251 = vpop.permute.xlu0 %250
    %254 = vset.pattern.permute.xlu0 0
    %255 = vperm.xlu0 %254, %v97
    %v256 = vpop.permute.xlu0 %255
    %259 = vset.pattern.permute.xlu0 0
    %260 = vperm.xlu0 %259, %v98
    %v261 = vpop.permute.xlu0 %260
    %264 = vset.pattern.permute.xlu0 0
    %265 = vperm.xlu0 %264, %v99
    %v266 = vpop.permute.xlu0 %265
    %269 = vset.pattern.permute.xlu0 0
    %270 = vperm.xlu0 %269, %v100
    %v271 = vpop.permute.xlu0 %270
    %274 = vset.pattern.permute.xlu0 0
    %275 = vperm.xlu0 %274, %v101
    %v276 = vpop.permute.xlu0 %275
    %279 = vset.pattern.permute.xlu0 0
    %280 = vperm.xlu0 %279, %v102
    %v281 = vpop.permute.xlu0 %280
    %284 = vset.pattern.permute.xlu0 0
    %285 = vperm.xlu0 %284, %v103
    %v286 = vpop.permute.xlu0 %285
    %289 = vset.pattern.permute.xlu0 0
    %290 = vperm.xlu0 %289, %v104
    %v291 = vpop.permute.xlu0 %290
    %294 = vset.pattern.permute.xlu0 0
    %295 = vperm.xlu0 %294, %v105
    %v296 = vpop.permute.xlu0 %295
    %299 = vset.pattern.permute.xlu0 0
    %300 = vperm.xlu0 %299, %v106
    %v301 = vpop.permute.xlu0 %300
    %304 = vset.pattern.permute.xlu0 0
    %305 = vperm.xlu0 %304, %v107
    %v306 = vpop.permute.xlu0 %305
    %309 = vset.pattern.permute.xlu0 0
    %310 = vperm.xlu0 %309, %v108
    %v311 = vpop.permute.xlu0 %310
    %314 = vset.pattern.permute.xlu0 0
    %315 = vperm.xlu0 %314, %v109
    %v316 = vpop.permute.xlu0 %315
    %319 = vset.pattern.permute.xlu0 0
    %320 = vperm.xlu0 %319, %v110
    %v321 = vpop.permute.xlu0 %320
    %324 = vset.pattern.permute.xlu0 0
    %325 = vperm.xlu0 %324, %v111
    %v326 = vpop.permute.xlu0 %325
    %329 = vset.pattern.permute.xlu0 0
    %330 = vperm.xlu0 %329, %v112
    %v331 = vpop.permute.xlu0 %330
    %334 = vset.pattern.permute.xlu0 0
    %335 = vperm.xlu0 %334, %v113
    %v336 = vpop.permute.xlu0 %335
    %339 = vset.pattern.permute.xlu0 0
    %340 = vperm.xlu0 %339, %v114
    %v341 = vpop.permute.xlu0 %340
    %344 = vset.pattern.permute.xlu0 0
    %345 = vperm.xlu0 %344, %v115
    %v346 = vpop.permute.xlu0 %345
    %349 = vset.pattern.permute.xlu0 0
    %350 = vperm.xlu0 %349, %v116
    %v351 = vpop.permute.xlu0 %350
    %354 = vset.pattern.permute.xlu0 0
    %355 = vperm.xlu0 %354, %v117
    %v356 = vpop.permute.xlu0 %355
    %vm358 = vcmask 64512
    %v360 = vsel %vm358, %v21, 0
    %v363 = vsel %vm358, %v22, 0
    %v366 = vsel %vm358, %v23, 0
    %v369 = vsel %vm358, %v24, 0
    %v372 = vsel %vm358, %v25, 0
    %v375 = vsel %vm358, %v26, 0
    %v378 = vsel %vm358, %v27, 0
    %v381 = vsel %vm358, %v28, 0
    %v384 = vsel %vm358, %v29, 0
    %v387 = vsel %vm358, %v30, 0
    %v390 = vsel %vm358, %v31, 0
    %v393 = vsel %vm358, %v32, 0
    %v396 = vsel %vm358, %v33, 0
    %v399 = vsel %vm358, %v34, 0
    %v402 = vsel %vm358, %v35, 0
    %v405 = vsel %vm358, %v36, 0
    %v408 = vsel %vm358, %v37, 0
    %v411 = vsel %vm358, %v38, 0
    %v414 = vsel %vm358, %v39, 0
    %v417 = vsel %vm358, %v40, 0
    %v420 = vsel %vm358, %v41, 0
    %v423 = vsel %vm358, %v42, 0
    %v426 = vsel %vm358, %v43, 0
    %v429 = vsel %vm358, %v44, 0
    %v432 = vsel %vm358, %v45, 0
    %v435 = vsel %vm358, %v46, 0
    %v438 = vsel %vm358, %v47, 0
    %v441 = vsel %vm358, %v48, 0
    %v444 = vsel %vm358, %v49, 0
    %v447 = vsel %vm358, %v50, 0
    %v450 = vsel %vm358, %v51, 0
    %v453 = vsel %vm358, %v52, 0
    %v456 = vsel %vm358, %v53, 0
    %v459 = vsel %vm358, %v54, 0
    %v462 = vsel %vm358, %v55, 0
    %v465 = vsel %vm358, %v56, 0
    %v468 = vsel %vm358, %v57, 0
    %v471 = vsel %vm358, %v58, 0
    %v474 = vsel %vm358, %v59, 0
    %v477 = vsel %vm358, %v60, 0
    %v480 = vsel %vm358, %v61, 0
    %v483 = vsel %vm358, %v62, 0
    %v486 = vsel %vm358, %v63, 0
    %v489 = vsel %vm358, %v64, 0
    %v492 = vsel %vm358, %v65, 0
    %v495 = vsel %vm358, %v66, 0
    %v498 = vsel %vm358, %v67, 0
    %v501 = vsel %vm358, %v68, 0
    %503 = vmatprep.subr.mxu0 0.0
    %504 = vmatpush1.msra.mxu0 0.0
    %505 = vmatprep.subr.mxu0 0.0
    %506 = vmatpush1.msra.mxu0 0.0
    %507 = vmatprep.subr.mxu0 0.0
    %508 = vmatpush1.msra.mxu0 0.0
    %509 = vmatprep.subr.mxu0 0.0
    %510 = vmatpush1.msra.mxu0 0.0
    %511 = vmatprep.subr.mxu0 0.0
    %512 = vmatpush1.msra.mxu0 0.0
    %513 = vmatprep.subr.mxu0 0.0
    %514 = vmatpush1.msra.mxu0 0.0
    %515 = vmatprep.subr.mxu0 0.0
    %516 = vmatpush1.msra.mxu0 0.0
    %517 = vmatprep.subr.mxu0 0.0
    %518 = vmatpush1.msra.mxu0 0.0
    %519 = vmatprep.subr.mxu0 0.0
    %520 = vmatpush1.msra.mxu0 0.0
    %521 = vmatprep.subr.mxu0 0.0
    %522 = vmatpush1.msra.mxu0 0.0
    %523 = vmatprep.subr.mxu0 0.0
    %524 = vmatpush1.msra.mxu0 0.0
    %525 = vmatprep.subr.mxu0 0.0
    %526 = vmatpush1.msra.mxu0 0.0
    %527 = vmatprep.subr.mxu0 0.0
    %528 = vmatpush1.msra.mxu0 0.0
    %529 = vmatprep.subr.mxu0 0.0
    %530 = vmatpush1.msra.mxu0 0.0
    %531 = vmatprep.subr.mxu0 0.0
    %532 = vmatpush1.msra.mxu0 0.0
    %533 = vmatprep.subr.mxu0 0.0
    %534 = vmatpush1.msra.mxu0 %v69
    %535 = vmatprep.subr.mxu0 0.0
    %536 = vmatpush2.msra.mxu0 0.0
    %537 = vmatprep.subr.mxu0 0.0
    %538 = vmatpush2.msra.mxu0 0.0
    %539 = vmatprep.subr.mxu0 0.0
    %540 = vmatpush2.msra.mxu0 0.0
    %541 = vmatprep.subr.mxu0 0.0
    %542 = vmatpush2.msra.mxu0 0.0
    %543 = vmatprep.subr.mxu0 0.0
    %544 = vmatpush2.msra.mxu0 0.0
    %545 = vmatprep.subr.mxu0 0.0
    %546 = vmatpush2.msra.mxu0 0.0
    %547 = vmatprep.subr.mxu0 0.0
    %548 = vmatpush2.msra.mxu0 0.0
    %549 = vmatprep.subr.mxu0 0.0
    %550 = vmatpush2.msra.mxu0 0.0
    %551 = vmatprep.subr.mxu0 0.0
    %552 = vmatpush2.msra.mxu0 0.0
    %553 = vmatprep.subr.mxu0 0.0
    %554 = vmatpush2.msra.mxu0 0.0
    %555 = vmatprep.subr.mxu0 0.0
    %556 = vmatpush2.msra.mxu0 0.0
    %557 = vmatprep.subr.mxu0 0.0
    %558 = vmatpush2.msra.mxu0 0.0
    %559 = vmatprep.subr.mxu0 0.0
    %560 = vmatpush2.msra.mxu0 0.0
    %561 = vmatprep.subr.mxu0 0.0
    %562 = vmatpush2.msra.mxu0 0.0
    %563 = vmatprep.subr.mxu0 0.0
    %564 = vmatpush2.msra.mxu0 0.0
    %565 = vmatprep.subr.mxu0 0.0
    %566 = vmatpush2.msra.mxu0 0.0
    %567 = vmatprep.mubr.f32.mxu0 0.0
    %568 = vmatmul.mubr.f32.gmra.mxu0 %v360
    %v569 = vpop.f32.mrf.mxu0
    %v570 = vadd.f32 %v121, %v569
    %v571 = vpop.f32.mrf.mxu0
    %572 = vmatprep.mubr.f32.mxu0 0.0
    %573 = vmatmul.mubr.f32.gmra.mxu0 %v363
    %v574 = vpop.f32.mrf.mxu0
    %v575 = vadd.f32 %v126, %v574
    %v576 = vpop.f32.mrf.mxu0
    %577 = vmatprep.mubr.f32.mxu0 0.0
    %578 = vmatmul.mubr.f32.gmra.mxu0 %v366
    %v579 = vpop.f32.mrf.mxu0
    %v580 = vadd.f32 %v131, %v579
    %v581 = vpop.f32.mrf.mxu0
    %582 = vmatprep.mubr.f32.mxu0 0.0
    %583 = vmatmul.mubr.f32.gmra.mxu0 %v369
    %v584 = vpop.f32.mrf.mxu0
    %v585 = vadd.f32 %v136, %v584
    %v586 = vpop.f32.mrf.mxu0
    %587 = vmatprep.mubr.f32.mxu0 0.0
    %588 = vmatmul.mubr.f32.gmra.mxu0 %v372
    %v589 = vpop.f32.mrf.mxu0
    %v590 = vadd.f32 %v141, %v589
    %v591 = vpop.f32.mrf.mxu0
    %592 = vmatprep.mubr.f32.mxu0 0.0
    %593 = vmatmul.mubr.f32.gmra.mxu0 %v375
    %v594 = vpop.f32.mrf.mxu0
    %v595 = vadd.f32 %v146, %v594
    %v596 = vpop.f32.mrf.mxu0
    %597 = vmatprep.mubr.f32.mxu0 0.0
    %598 = vmatmul.mubr.f32.gmra.mxu0 %v378
    %v599 = vpop.f32.mrf.mxu0
    %v600 = vadd.f32 %v151, %v599
    %v601 = vpop.f32.mrf.mxu0
    %602 = vmatprep.mubr.f32.mxu0 0.0
    %603 = vmatmul.mubr.f32.gmra.mxu0 %v381
    %v604 = vpop.f32.mrf.mxu0
    %v605 = vadd.f32 %v156, %v604
    %v606 = vpop.f32.mrf.mxu0
    %607 = vmatprep.mubr.f32.mxu0 0.0
    %608 = vmatmul.mubr.f32.gmra.mxu0 %v384
    %v609 = vpop.f32.mrf.mxu0
    %v610 = vadd.f32 %v161, %v609
    %v611 = vpop.f32.mrf.mxu0
    %612 = vmatprep.mubr.f32.mxu0 0.0
    %613 = vmatmul.mubr.f32.gmra.mxu0 %v387
    %v614 = vpop.f32.mrf.mxu0
    %v615 = vadd.f32 %v166, %v614
    %v616 = vpop.f32.mrf.mxu0
    %617 = vmatprep.mubr.f32.mxu0 0.0
    %618 = vmatmul.mubr.f32.gmra.mxu0 %v390
    %v619 = vpop.f32.mrf.mxu0
    %v620 = vadd.f32 %v171, %v619
    %v621 = vpop.f32.mrf.mxu0
    %622 = vmatprep.mubr.f32.mxu0 0.0
    %623 = vmatmul.mubr.f32.gmra.mxu0 %v393
    %v624 = vpop.f32.mrf.mxu0
    %v625 = vadd.f32 %v176, %v624
    %v626 = vpop.f32.mrf.mxu0
    %627 = vmatprep.mubr.f32.mxu0 0.0
    %628 = vmatmul.mubr.f32.gmra.mxu0 %v396
    %v629 = vpop.f32.mrf.mxu0
    %v630 = vadd.f32 %v181, %v629
    %v631 = vpop.f32.mrf.mxu0
    %632 = vmatprep.mubr.f32.mxu0 0.0
    %633 = vmatmul.mubr.f32.gmra.mxu0 %v399
    %v634 = vpop.f32.mrf.mxu0
    %v635 = vadd.f32 %v186, %v634
    %v636 = vpop.f32.mrf.mxu0
    %637 = vmatprep.mubr.f32.mxu0 0.0
    %638 = vmatmul.mubr.f32.gmra.mxu0 %v402
    %v639 = vpop.f32.mrf.mxu0
    %v640 = vadd.f32 %v191, %v639
    %v641 = vpop.f32.mrf.mxu0
    %642 = vmatprep.mubr.f32.mxu0 0.0
    %643 = vmatmul.mubr.f32.gmra.mxu0 %v405
    %v644 = vpop.f32.mrf.mxu0
    %v645 = vadd.f32 %v196, %v644
    %v646 = vpop.f32.mrf.mxu0
    %647 = vmatprep.mubr.f32.mxu0 0.0
    %648 = vmatmul.mubr.f32.gmra.mxu0 %v408
    %v649 = vpop.f32.mrf.mxu0
    %v650 = vadd.f32 %v201, %v649
    %v651 = vpop.f32.mrf.mxu0
    %652 = vmatprep.mubr.f32.mxu0 0.0
    %653 = vmatmul.mubr.f32.gmra.mxu0 %v411
    %v654 = vpop.f32.mrf.mxu0
    %v655 = vadd.f32 %v206, %v654
    %v656 = vpop.f32.mrf.mxu0
    %657 = vmatprep.mubr.f32.mxu0 0.0
    %658 = vmatmul.mubr.f32.gmra.mxu0 %v414
    %v659 = vpop.f32.mrf.mxu0
    %v660 = vadd.f32 %v211, %v659
    %v661 = vpop.f32.mrf.mxu0
    %662 = vmatprep.mubr.f32.mxu0 0.0
    %663 = vmatmul.mubr.f32.gmra.mxu0 %v417
    %v664 = vpop.f32.mrf.mxu0
    %v665 = vadd.f32 %v216, %v664
    %v666 = vpop.f32.mrf.mxu0
    %667 = vmatprep.mubr.f32.mxu0 0.0
    %668 = vmatmul.mubr.f32.gmra.mxu0 %v420
    %v669 = vpop.f32.mrf.mxu0
    %v670 = vadd.f32 %v221, %v669
    %v671 = vpop.f32.mrf.mxu0
    %672 = vmatprep.mubr.f32.mxu0 0.0
    %673 = vmatmul.mubr.f32.gmra.mxu0 %v423
    %v674 = vpop.f32.mrf.mxu0
    %v675 = vadd.f32 %v226, %v674
    %v676 = vpop.f32.mrf.mxu0
    %677 = vmatprep.mubr.f32.mxu0 0.0
    %678 = vmatmul.mubr.f32.gmra.mxu0 %v426
    %v679 = vpop.f32.mrf.mxu0
    %v680 = vadd.f32 %v231, %v679
    %v681 = vpop.f32.mrf.mxu0
    %682 = vmatprep.mubr.f32.mxu0 0.0
    %683 = vmatmul.mubr.f32.gmra.mxu0 %v429
    %v684 = vpop.f32.mrf.mxu0
    %v685 = vadd.f32 %v236, %v684
    %v686 = vpop.f32.mrf.mxu0
    %687 = vmatprep.mubr.f32.mxu0 0.0
    %688 = vmatmul.mubr.f32.gmra.mxu0 %v432
    %v689 = vpop.f32.mrf.mxu0
    %v690 = vadd.f32 %v241, %v689
    %v691 = vpop.f32.mrf.mxu0
    %692 = vmatprep.mubr.f32.mxu0 0.0
    %693 = vmatmul.mubr.f32.gmra.mxu0 %v435
    %v694 = vpop.f32.mrf.mxu0
    %v695 = vadd.f32 %v246, %v694
    %v696 = vpop.f32.mrf.mxu0
    %697 = vmatprep.mubr.f32.mxu0 0.0
    %698 = vmatmul.mubr.f32.gmra.mxu0 %v438
    %v699 = vpop.f32.mrf.mxu0
    %v700 = vadd.f32 %v251, %v699
    %v701 = vpop.f32.mrf.mxu0
    %702 = vmatprep.mubr.f32.mxu0 0.0
    %703 = vmatmul.mubr.f32.gmra.mxu0 %v441
    %v704 = vpop.f32.mrf.mxu0
    %v705 = vadd.f32 %v256, %v704
    %v706 = vpop.f32.mrf.mxu0
    %707 = vmatprep.mubr.f32.mxu0 0.0
    %708 = vmatmul.mubr.f32.gmra.mxu0 %v444
    %v709 = vpop.f32.mrf.mxu0
    %v710 = vadd.f32 %v261, %v709
    %v711 = vpop.f32.mrf.mxu0
    %712 = vmatprep.mubr.f32.mxu0 0.0
    %713 = vmatmul.mubr.f32.gmra.mxu0 %v447
    %v714 = vpop.f32.mrf.mxu0
    %v715 = vadd.f32 %v266, %v714
    %v716 = vpop.f32.mrf.mxu0
    %717 = vmatprep.mubr.f32.mxu0 0.0
    %718 = vmatmul.mubr.f32.gmra.mxu0 %v450
    %v719 = vpop.f32.mrf.mxu0
    %v720 = vadd.f32 %v271, %v719
    %v721 = vpop.f32.mrf.mxu0
    %722 = vmatprep.mubr.f32.mxu0 0.0
    %723 = vmatmul.mubr.f32.gmra.mxu0 %v453
    %v724 = vpop.f32.mrf.mxu0
    %v725 = vadd.f32 %v276, %v724
    %v726 = vpop.f32.mrf.mxu0
    %727 = vmatprep.mubr.f32.mxu0 0.0
    %728 = vmatmul.mubr.f32.gmra.mxu0 %v456
    %v729 = vpop.f32.mrf.mxu0
    %v730 = vadd.f32 %v281, %v729
    %v731 = vpop.f32.mrf.mxu0
    %732 = vmatprep.mubr.f32.mxu0 0.0
    %733 = vmatmul.mubr.f32.gmra.mxu0 %v459
    %v734 = vpop.f32.mrf.mxu0
    %v735 = vadd.f32 %v286, %v734
    %v736 = vpop.f32.mrf.mxu0
    %737 = vmatprep.mubr.f32.mxu0 0.0
    %738 = vmatmul.mubr.f32.gmra.mxu0 %v462
    %v739 = vpop.f32.mrf.mxu0
    %v740 = vadd.f32 %v291, %v739
    %v741 = vpop.f32.mrf.mxu0
    %742 = vmatprep.mubr.f32.mxu0 0.0
    %743 = vmatmul.mubr.f32.gmra.mxu0 %v465
    %v744 = vpop.f32.mrf.mxu0
    %v745 = vadd.f32 %v296, %v744
    %v746 = vpop.f32.mrf.mxu0
    %747 = vmatprep.mubr.f32.mxu0 0.0
    %748 = vmatmul.mubr.f32.gmra.mxu0 %v468
    %v749 = vpop.f32.mrf.mxu0
    %v750 = vadd.f32 %v301, %v749
    %v751 = vpop.f32.mrf.mxu0
    %752 = vmatprep.mubr.f32.mxu0 0.0
    %753 = vmatmul.mubr.f32.gmra.mxu0 %v471
    %v754 = vpop.f32.mrf.mxu0
    %v755 = vadd.f32 %v306, %v754
    %v756 = vpop.f32.mrf.mxu0
    %757 = vmatprep.mubr.f32.mxu0 0.0
    %758 = vmatmul.mubr.f32.gmra.mxu0 %v474
    %v759 = vpop.f32.mrf.mxu0
    %v760 = vadd.f32 %v311, %v759
    %v761 = vpop.f32.mrf.mxu0
    %762 = vmatprep.mubr.f32.mxu0 0.0
    %763 = vmatmul.mubr.f32.gmra.mxu0 %v477
    %v764 = vpop.f32.mrf.mxu0
    %v765 = vadd.f32 %v316, %v764
    %v766 = vpop.f32.mrf.mxu0
    %767 = vmatprep.mubr.f32.mxu0 0.0
    %768 = vmatmul.mubr.f32.gmra.mxu0 %v480
    %v769 = vpop.f32.mrf.mxu0
    %v770 = vadd.f32 %v321, %v769
    %v771 = vpop.f32.mrf.mxu0
    %772 = vmatprep.mubr.f32.mxu0 0.0
    %773 = vmatmul.mubr.f32.gmra.mxu0 %v483
    %v774 = vpop.f32.mrf.mxu0
    %v775 = vadd.f32 %v326, %v774
    %v776 = vpop.f32.mrf.mxu0
    %777 = vmatprep.mubr.f32.mxu0 0.0
    %778 = vmatmul.mubr.f32.gmra.mxu0 %v486
    %v779 = vpop.f32.mrf.mxu0
    %v780 = vadd.f32 %v331, %v779
    %v781 = vpop.f32.mrf.mxu0
    %782 = vmatprep.mubr.f32.mxu0 0.0
    %783 = vmatmul.mubr.f32.gmra.mxu0 %v489
    %v784 = vpop.f32.mrf.mxu0
    %v785 = vadd.f32 %v336, %v784
    %v786 = vpop.f32.mrf.mxu0
    %787 = vmatprep.mubr.f32.mxu0 0.0
    %788 = vmatmul.mubr.f32.gmra.mxu0 %v492
    %v789 = vpop.f32.mrf.mxu0
    %v790 = vadd.f32 %v341, %v789
    %v791 = vpop.f32.mrf.mxu0
    %792 = vmatprep.mubr.f32.mxu0 0.0
    %793 = vmatmul.mubr.f32.gmra.mxu0 %v495
    %v794 = vpop.f32.mrf.mxu0
    %v795 = vadd.f32 %v346, %v794
    %v796 = vpop.f32.mrf.mxu0
    %797 = vmatprep.mubr.f32.mxu0 0.0
    %798 = vmatmul.mubr.f32.gmra.mxu0 %v498
    %v799 = vpop.f32.mrf.mxu0
    %v800 = vadd.f32 %v351, %v799
    %v801 = vpop.f32.mrf.mxu0
    %802 = vmatprep.mubr.f32.mxu0 0.0
    %803 = vmatmul.mubr.f32.gmra.mxu0 %v501
    %v804 = vpop.f32.mrf.mxu0
    %v805 = vadd.f32 %v356, %v804
    %v806 = vpop.f32.mrf.mxu0
    %807 = vdwg.mxu0
    %v808 = vxor.u32 %v570, 2147483648
    %v809 = vxor.u32 %v575, 2147483648
    %v810 = vxor.u32 %v580, 2147483648
    %v811 = vxor.u32 %v585, 2147483648
    %v812 = vxor.u32 %v590, 2147483648
    %v813 = vxor.u32 %v595, 2147483648
    %v814 = vxor.u32 %v600, 2147483648
    %v815 = vxor.u32 %v605, 2147483648
    %v816 = vxor.u32 %v610, 2147483648
    %v817 = vxor.u32 %v615, 2147483648
    %v818 = vxor.u32 %v620, 2147483648
    %v819 = vxor.u32 %v625, 2147483648
    %v820 = vxor.u32 %v630, 2147483648
    %v821 = vxor.u32 %v635, 2147483648
    %v822 = vxor.u32 %v640, 2147483648
    %v823 = vxor.u32 %v645, 2147483648
    %v824 = vmul.f32 %v808, 1.442695
    %v825 = vpow.pop %v824
    %v826 = vmul.f32 %v809, 1.442695
    %v827 = vpow.pop %v826
    %v828 = vmul.f32 %v810, 1.442695
    %v829 = vpow.pop %v828
    %v830 = vmul.f32 %v811, 1.442695
    %v831 = vpow.pop %v830
    %v832 = vmul.f32 %v812, 1.442695
    %v833 = vpow.pop %v832
    %v834 = vmul.f32 %v813, 1.442695
    %v835 = vpow.pop %v834
    %v836 = vmul.f32 %v814, 1.442695
    %v837 = vpow.pop %v836
    %v838 = vmul.f32 %v815, 1.442695
    %v839 = vpow.pop %v838
    %v840 = vmul.f32 %v816, 1.442695
    %v841 = vpow.pop %v840
    %v842 = vmul.f32 %v817, 1.442695
    %v843 = vpow.pop %v842
    %v844 = vmul.f32 %v818, 1.442695
    %v845 = vpow.pop %v844
    %v846 = vmul.f32 %v819, 1.442695
    %v847 = vpow.pop %v846
    %v848 = vmul.f32 %v820, 1.442695
    %v849 = vpow.pop %v848
    %v850 = vmul.f32 %v821, 1.442695
    %v851 = vpow.pop %v850
    %v852 = vmul.f32 %v822, 1.442695
    %v853 = vpow.pop %v852
    %v854 = vmul.f32 %v823, 1.442695
    %v855 = vpow.pop %v854
    %v856 = vadd.f32 %v825, 1.0
    %v857 = vadd.f32 %v827, 1.0
    %v858 = vadd.f32 %v829, 1.0
    %v859 = vadd.f32 %v831, 1.0
    %v860 = vadd.f32 %v833, 1.0
    %v861 = vadd.f32 %v835, 1.0
    %v862 = vadd.f32 %v837, 1.0
    %v863 = vadd.f32 %v839, 1.0
    %v864 = vadd.f32 %v841, 1.0
    %v865 = vadd.f32 %v843, 1.0
    %v866 = vadd.f32 %v845, 1.0
    %v867 = vadd.f32 %v847, 1.0
    %v868 = vadd.f32 %v849, 1.0
    %v869 = vadd.f32 %v851, 1.0
    %v870 = vadd.f32 %v853, 1.0
    %v871 = vadd.f32 %v855, 1.0
    %v872 = vrcp.pop %v856
    %v873 = vmul.f32 1.0, %v872
    %v874 = vrcp.pop %v857
    %v875 = vmul.f32 1.0, %v874
    %v876 = vrcp.pop %v858
    %v877 = vmul.f32 1.0, %v876
    %v878 = vrcp.pop %v859
    %v879 = vmul.f32 1.0, %v878
    %v880 = vrcp.pop %v860
    %v881 = vmul.f32 1.0, %v880
    %v882 = vrcp.pop %v861
    %v883 = vmul.f32 1.0, %v882
    %v884 = vrcp.pop %v862
    %v885 = vmul.f32 1.0, %v884
    %v886 = vrcp.pop %v863
    %v887 = vmul.f32 1.0, %v886
    %v888 = vrcp.pop %v864
    %v889 = vmul.f32 1.0, %v888
    %v890 = vrcp.pop %v865
    %v891 = vmul.f32 1.0, %v890
    %v892 = vrcp.pop %v866
    %v893 = vmul.f32 1.0, %v892
    %v894 = vrcp.pop %v867
    %v895 = vmul.f32 1.0, %v894
    %v896 = vrcp.pop %v868
    %v897 = vmul.f32 1.0, %v896
    %v898 = vrcp.pop %v869
    %v899 = vmul.f32 1.0, %v898
    %v900 = vrcp.pop %v870
    %v901 = vmul.f32 1.0, %v900
    %v902 = vrcp.pop %v871
    %v903 = vmul.f32 1.0, %v902
    %v904 = vtanh.pop %v650
    %v905 = vtanh.pop %v655
    %v906 = vtanh.pop %v660
    %v907 = vtanh.pop %v665
    %v908 = vtanh.pop %v670
    %v909 = vtanh.pop %v675
    %v910 = vtanh.pop %v680
    %v911 = vtanh.pop %v685
    %v912 = vtanh.pop %v690
    %v913 = vtanh.pop %v695
    %v914 = vtanh.pop %v700
    %v915 = vtanh.pop %v705
    %v916 = vtanh.pop %v710
    %v917 = vtanh.pop %v715
    %v918 = vtanh.pop %v720
    %v919 = vtanh.pop %v725
    %v920 = vxor.u32 %v730, 2147483648
    %v921 = vxor.u32 %v735, 2147483648
    %v922 = vxor.u32 %v740, 2147483648
    %v923 = vxor.u32 %v745, 2147483648
    %v924 = vxor.u32 %v750, 2147483648
    %v925 = vxor.u32 %v755, 2147483648
    %v926 = vxor.u32 %v760, 2147483648
    %v927 = vxor.u32 %v765, 2147483648
    %v928 = vxor.u32 %v770, 2147483648
    %v929 = vxor.u32 %v775, 2147483648
    %v930 = vxor.u32 %v780, 2147483648
    %v931 = vxor.u32 %v785, 2147483648
    %v932 = vxor.u32 %v790, 2147483648
    %v933 = vxor.u32 %v795, 2147483648
    %v934 = vxor.u32 %v800, 2147483648
    %v935 = vxor.u32 %v805, 2147483648
    %v936 = vmul.f32 %v920, 1.442695
    %v937 = vpow.pop %v936
    %v938 = vmul.f32 %v921, 1.442695
    %v939 = vpow.pop %v938
    %v940 = vmul.f32 %v922, 1.442695
    %v941 = vpow.pop %v940
    %v942 = vmul.f32 %v923, 1.442695
    %v943 = vpow.pop %v942
    %v944 = vmul.f32 %v924, 1.442695
    %v945 = vpow.pop %v944
    %v946 = vmul.f32 %v925, 1.442695
    %v947 = vpow.pop %v946
    %v948 = vmul.f32 %v926, 1.442695
    %v949 = vpow.pop %v948
    %v950 = vmul.f32 %v927, 1.442695
    %v951 = vpow.pop %v950
    %v952 = vmul.f32 %v928, 1.442695
    %v953 = vpow.pop %v952
    %v954 = vmul.f32 %v929, 1.442695
    %v955 = vpow.pop %v954
    %v956 = vmul.f32 %v930, 1.442695
    %v957 = vpow.pop %v956
    %v958 = vmul.f32 %v931, 1.442695
    %v959 = vpow.pop %v958
    %v960 = vmul.f32 %v932, 1.442695
    %v961 = vpow.pop %v960
    %v962 = vmul.f32 %v933, 1.442695
    %v963 = vpow.pop %v962
    %v964 = vmul.f32 %v934, 1.442695
    %v965 = vpow.pop %v964
    %v966 = vmul.f32 %v935, 1.442695
    %v967 = vpow.pop %v966
    %v968 = vadd.f32 %v937, 1.0
    %v969 = vadd.f32 %v939, 1.0
    %v970 = vadd.f32 %v941, 1.0
    %v971 = vadd.f32 %v943, 1.0
    %v972 = vadd.f32 %v945, 1.0
    %v973 = vadd.f32 %v947, 1.0
    %v974 = vadd.f32 %v949, 1.0
    %v975 = vadd.f32 %v951, 1.0
    %v976 = vadd.f32 %v953, 1.0
    %v977 = vadd.f32 %v955, 1.0
    %v978 = vadd.f32 %v957, 1.0
    %v979 = vadd.f32 %v959, 1.0
    %v980 = vadd.f32 %v961, 1.0
    %v981 = vadd.f32 %v963, 1.0
    %v982 = vadd.f32 %v965, 1.0
    %v983 = vadd.f32 %v967, 1.0
    %v984 = vrcp.pop %v968
    %v985 = vmul.f32 1.0, %v984
    %v986 = vrcp.pop %v969
    %v987 = vmul.f32 1.0, %v986
    %v988 = vrcp.pop %v970
    %v989 = vmul.f32 1.0, %v988
    %v990 = vrcp.pop %v971
    %v991 = vmul.f32 1.0, %v990
    %v992 = vrcp.pop %v972
    %v993 = vmul.f32 1.0, %v992
    %v994 = vrcp.pop %v973
    %v995 = vmul.f32 1.0, %v994
    %v996 = vrcp.pop %v974
    %v997 = vmul.f32 1.0, %v996
    %v998 = vrcp.pop %v975
    %v999 = vmul.f32 1.0, %v998
    %v1000 = vrcp.pop %v976
    %v1001 = vmul.f32 1.0, %v1000
    %v1002 = vrcp.pop %v977
    %v1003 = vmul.f32 1.0, %v1002
    %v1004 = vrcp.pop %v978
    %v1005 = vmul.f32 1.0, %v1004
    %v1006 = vrcp.pop %v979
    %v1007 = vmul.f32 1.0, %v1006
    %v1008 = vrcp.pop %v980
    %v1009 = vmul.f32 1.0, %v1008
    %v1010 = vrcp.pop %v981
    %v1011 = vmul.f32 1.0, %v1010
    %v1012 = vrcp.pop %v982
    %v1013 = vmul.f32 1.0, %v1012
    %v1014 = vrcp.pop %v983
    %v1015 = vmul.f32 1.0, %v1014
    %v1016 = vmul.f32 %v873, %v904
    %v1017 = vmul.f32 %v875, %v905
    %v1018 = vmul.f32 %v877, %v906
    %v1019 = vmul.f32 %v879, %v907
    %v1020 = vmul.f32 %v881, %v908
    %v1021 = vmul.f32 %v883, %v909
    %v1022 = vmul.f32 %v885, %v910
    %v1023 = vmul.f32 %v887, %v911
    %v1024 = vmul.f32 %v889, %v912
    %v1025 = vmul.f32 %v891, %v913
    %v1026 = vmul.f32 %v893, %v914
    %v1027 = vmul.f32 %v895, %v915
    %v1028 = vmul.f32 %v897, %v916
    %v1029 = vmul.f32 %v899, %v917
    %v1030 = vmul.f32 %v901, %v918
    %v1031 = vmul.f32 %v903, %v919
    %v1032 = vtanh.pop %v1016
    %v1033 = vtanh.pop %v1017
    %v1034 = vtanh.pop %v1018
    %v1035 = vtanh.pop %v1019
    %v1036 = vtanh.pop %v1020
    %v1037 = vtanh.pop %v1021
    %v1038 = vtanh.pop %v1022
    %v1039 = vtanh.pop %v1023
    %v1040 = vtanh.pop %v1024
    %v1041 = vtanh.pop %v1025
    %v1042 = vtanh.pop %v1026
    %v1043 = vtanh.pop %v1027
    %v1044 = vtanh.pop %v1028
    %v1045 = vtanh.pop %v1029
    %v1046 = vtanh.pop %v1030
    %v1047 = vtanh.pop %v1031
    %v1048 = vmul.f32 %v985, %v1032
    %v1049 = vmul.f32 %v987, %v1033
    %v1050 = vmul.f32 %v989, %v1034
    %v1051 = vmul.f32 %v991, %v1035
    %v1052 = vmul.f32 %v993, %v1036
    %v1053 = vmul.f32 %v995, %v1037
    %v1054 = vmul.f32 %v997, %v1038
    %v1055 = vmul.f32 %v999, %v1039
    %v1056 = vmul.f32 %v1001, %v1040
    %v1057 = vmul.f32 %v1003, %v1041
    %v1058 = vmul.f32 %v1005, %v1042
    %v1059 = vmul.f32 %v1007, %v1043
    %v1060 = vmul.f32 %v1009, %v1044
    %v1061 = vmul.f32 %v1011, %v1045
    %v1062 = vmul.f32 %v1013, %v1046
    %v1063 = vmul.f32 %v1015, %v1047
    %v1064 = vld [vmem:[%s3] sm:$0xf]
    %v1065 = vld [vmem:[%s4] sm:$0xf]
    %1067 = vset.pattern.permute.xlu0 0
    %1068 = vperm.xlu0 %1067, %v1065
    %v1069 = vpop.permute.xlu0 %1068
    %1071 = vmatprep.subr.mxu0 0.0
    %1072 = vmatpush1.msra.mxu0 %v1063
    %1073 = vmatprep.subr.mxu0 0.0
    %1074 = vmatpush1.msra.mxu0 %v1062
    %1075 = vmatprep.subr.mxu0 0.0
    %1076 = vmatpush1.msra.mxu0 %v1061
    %1077 = vmatprep.subr.mxu0 0.0
    %1078 = vmatpush1.msra.mxu0 %v1060
    %1079 = vmatprep.subr.mxu0 0.0
    %1080 = vmatpush1.msra.mxu0 %v1059
    %1081 = vmatprep.subr.mxu0 0.0
    %1082 = vmatpush1.msra.mxu0 %v1058
    %1083 = vmatprep.subr.mxu0 0.0
    %1084 = vmatpush1.msra.mxu0 %v1057
    %1085 = vmatprep.subr.mxu0 0.0
    %1086 = vmatpush1.msra.mxu0 %v1056
    %1087 = vmatprep.subr.mxu0 0.0
    %1088 = vmatpush1.msra.mxu0 %v1055
    %1089 = vmatprep.subr.mxu0 0.0
    %1090 = vmatpush1.msra.mxu0 %v1054
    %1091 = vmatprep.subr.mxu0 0.0
    %1092 = vmatpush1.msra.mxu0 %v1053
    %1093 = vmatprep.subr.mxu0 0.0
    %1094 = vmatpush1.msra.mxu0 %v1052
    %1095 = vmatprep.subr.mxu0 0.0
    %1096 = vmatpush1.msra.mxu0 %v1051
    %1097 = vmatprep.subr.mxu0 0.0
    %1098 = vmatpush1.msra.mxu0 %v1050
    %1099 = vmatprep.subr.mxu0 0.0
    %1100 = vmatpush1.msra.mxu0 %v1049
    %1101 = vmatprep.subr.mxu0 0.0
    %1102 = vmatpush1.msra.mxu0 %v1048
    %1103 = vmatprep.subr.mxu0 0.0
    %1104 = vmatpush2.msra.mxu0 0.0
    %1105 = vmatprep.subr.mxu0 0.0
    %1106 = vmatpush2.msra.mxu0 0.0
    %1107 = vmatprep.subr.mxu0 0.0
    %1108 = vmatpush2.msra.mxu0 0.0
    %1109 = vmatprep.subr.mxu0 0.0
    %1110 = vmatpush2.msra.mxu0 0.0
    %1111 = vmatprep.subr.mxu0 0.0
    %1112 = vmatpush2.msra.mxu0 0.0
    %1113 = vmatprep.subr.mxu0 0.0
    %1114 = vmatpush2.msra.mxu0 0.0
    %1115 = vmatprep.subr.mxu0 0.0
    %1116 = vmatpush2.msra.mxu0 0.0
    %1117 = vmatprep.subr.mxu0 0.0
    %1118 = vmatpush2.msra.mxu0 0.0
    %1119 = vmatprep.subr.mxu0 0.0
    %1120 = vmatpush2.msra.mxu0 0.0
    %1121 = vmatprep.subr.mxu0 0.0
    %1122 = vmatpush2.msra.mxu0 0.0
    %1123 = vmatprep.subr.mxu0 0.0
    %1124 = vmatpush2.msra.mxu0 0.0
    %1125 = vmatprep.subr.mxu0 0.0
    %1126 = vmatpush2.msra.mxu0 0.0
    %1127 = vmatprep.subr.mxu0 0.0
    %1128 = vmatpush2.msra.mxu0 0.0
    %1129 = vmatprep.subr.mxu0 0.0
    %1130 = vmatpush2.msra.mxu0 0.0
    %1131 = vmatprep.subr.mxu0 0.0
    %1132 = vmatpush2.msra.mxu0 0.0
    %1133 = vmatprep.subr.mxu0 0.0
    %1134 = vmatpush2.msra.mxu0 0.0
    %1135 = vmatprep.mubr.f32.mxu0 0.0
    %1136 = vmatmul.mubr.f32.gmra.mxu0 %v1064
    %v1137 = vpop.f32.mrf.mxu0
    %v1138 = vadd.f32 %v1069, %v1137
    %v1139 = vpop.f32.mrf.mxu0
    %1140 = vdwg.mxu0
    %1141 = vst [vmem:[#allocation2] sm:$0xf] %v1138
    // Predicated region
    $region22: #{tpu_custom_call.1} parent=1 // pred_check
      _
    $region23: #{tpu_custom_call.1} parent=1 // pred_check_branch
      %1143 = sbr.rel (0) target = $region25
    $region24: #{tpu_custom_call.1} parent=1 // pred_region
      %s1145 = ssub.s32 64, 64
      %1146 = vsyncadd [#allocation3], %s1145
      %s1148 = sshll.u32 [#allocation2], 4
      %s1149 = int_to_ptr.vmem [resolvable:$true] %s1148
      %1151 = dma.vmem_to_hbm [thread:$0]  %s1149, 64, %s5, [#allocation3]
    $region25: #{tpu_custom_call.1} parent=1 // pred_fallthru
      _
    // Predicated region
    $region26: #{tpu_custom_call.1} parent=1 // pred_check
      _
    $region27: #{tpu_custom_call.1} parent=1 // pred_check_branch
      %1153 = sbr.rel (0) target = $region29
    $region28: #{tpu_custom_call.1} parent=1 // pred_region
      %1154 = dma.done [#allocation3], 64
    $region29: #{tpu_custom_call.1} parent=1 // pred_fallthru
      _
    %1155 = vsyncpa [#allocation3], 1

</llo_original>
